<compile_context>
chip_gen: v7x
topology: tpu7x:2x2x1
jax: 0.10.0
libtpu: 0.0.40
codegen_flags: <defaults>
</compile_context>

<pallas_src>
import functools

import jax
import jax.numpy as jnp
from jax.experimental import pallas as pl
from jax.experimental.pallas import tpu as pltpu

GAMMA = 0.0          # module default
CONS_LAMBDA = 0.5    # module default
# TODO(synk): alpha / ignore_index paths (module defaults are None) are not implemented.


def _fused_focal_kernel(gt_ref, ls_ref, lc_ref, out_ref, acc_ref, *,
                        gamma, cons_lambda, inv_n, hw, tile_hw, mask_last):
    i = pl.program_id(0)          # B*T index
    j = pl.program_id(1)          # H*W tile index
    first = jnp.logical_and(i == 0, j == 0)
    last = jnp.logical_and(i == pl.num_programs(0) - 1,
                           j == pl.num_programs(1) - 1)

    @pl.when(first)
    def _():
        acc_ref[...] = jnp.zeros_like(acc_ref)

    tgt = gt_ref[0]                                          # (1, tile_hw) int32

    def per_tensor_loss(logits_ref):
        logits = logits_ref[0].astype(jnp.float32)           # (K, tile_hw)
        m = jnp.max(logits, axis=0, keepdims=True)           # (1, tile_hw)
        shifted = logits - m
        lse = jnp.log(jnp.sum(jnp.exp(shifted), axis=0, keepdims=True))
        cls = jax.lax.broadcasted_iota(jnp.int32, logits.shape, 0)
        picked = jnp.sum(jnp.where(cls == tgt, shifted, 0.0),
                         axis=0, keepdims=True)              # (1, tile_hw)
        logpt = picked - lse                                  # (1, tile_hw)
        if gamma == 0.0:
            # fast path for the default config: no exp, no pow, no 0**0 hazard
            return -logpt
        pt = jnp.exp(logpt)
        return -((1.0 - pt) ** gamma) * logpt

    loss = per_tensor_loss(ls_ref) + cons_lambda * per_tensor_loss(lc_ref)

    if mask_last:  # only traced if H*W does not divide the tile (partial last tile)
        lane = jax.lax.broadcasted_iota(jnp.int32, (1, tile_hw), 1)
        valid = (j * tile_hw + lane) < hw
        loss = jnp.where(valid, loss, 0.0)

    # Per-lane partial sums (cheap VPU add); cross-lane reduce deferred to the end.
    acc_ref[...] += loss

    @pl.when(last)
    def _():
        total = jnp.sum(acc_ref[...], axis=1, keepdims=True)  # (1, 1)
        out_ref[...] = total * jnp.float32(inv_n)              # size_average=True


def _choose_tile_hw(hw, max_tile_hw):
    if hw % 128 != 0:
        return hw                 # full-extent last dim (always legal)
    return min(max_tile_hw, hw)   # lane-aligned tile, VMEM-budget friendly


def focal_loss_d3g(x, y, *, gamma=GAMMA, cons_lambda=CONS_LAMBDA,
                   max_tile_hw=32768):
    """x: dict with 'out_logits_s', 'out_logits_c' (B,T,K,H,W) float (f32 or bf16);
       y: dict with 'gt' (B,T,H,W) integer. Returns scalar loss."""
    ls = x['out_logits_s']
    lc = x['out_logits_c']
    b, t, k, h, w = ls.shape
    bt, hw = b * t, h * w

    # Free, contiguous reshapes: no XLA transpose, K stays in sublanes,
    # H*W goes to lanes. bf16 inputs are accepted as-is (cast in-kernel).
    ls3 = ls.reshape(bt, k, hw)
    lc3 = lc.reshape(bt, k, hw)
    gt3 = y['gt'].reshape(bt, 1, hw).astype(jnp.int32)

    tile_hw = _choose_tile_hw(hw, max_tile_hw)
    n_hw = pl.cdiv(hw, tile_hw)
    n_rows = bt * hw

    kernel = functools.partial(
        _fused_focal_kernel,
        gamma=float(gamma),
        cons_lambda=float(cons_lambda),
        inv_n=1.0 / float(n_rows),
        hw=hw,
        tile_hw=tile_hw,
        mask_last=(hw % tile_hw != 0),
    )

    out = pl.pallas_call(
        kernel,
        out_shape=jax.ShapeDtypeStruct((1, 1), jnp.float32),
        grid_spec=pltpu.PrefetchScalarGridSpec(
            num_scalar_prefetch=0,
            grid=(bt, n_hw),
            in_specs=[
                pl.BlockSpec((1, 1, tile_hw), lambda i, j: (i, 0, j)),   # gt
                pl.BlockSpec((1, k, tile_hw), lambda i, j: (i, 0, j)),   # logits_s
                pl.BlockSpec((1, k, tile_hw), lambda i, j: (i, 0, j)),   # logits_c
            ],
            out_specs=pl.BlockSpec((1, 1), lambda i, j: (0, 0)),
            scratch_shapes=[pltpu.VMEM((1, tile_hw), jnp.float32)],
        ),
        compiler_params=pltpu.CompilerParams(
            dimension_semantics=("arbitrary", "arbitrary")),
        # TODO(synk): v7x megacore sharding (parallel outer axis with per-shard
        # partial outputs) not implemented; single-TC sequential grid here.
    )(gt3, ls3, lc3)
    return out[0, 0]


if __name__ == "__main__":
    key = jax.random.PRNGKey(0)
    B, T, K, H, W = 2, 2, 4, 16, 16          # N = B*T*H*W = 1024

    k1, k2, k3 = jax.random.split(key, 3)
    out_logits_s = jax.random.normal(k1, (B, T, K, H, W), dtype=jnp.float32)
    out_logits_c = jax.random.normal(k2, (B, T, K, H, W), dtype=jnp.float32)
    gt = jax.random.randint(k3, (B, T, H, W), 0, K, dtype=jnp.int32)

    x = {'out_logits_s': out_logits_s, 'out_logits_c': out_logits_c}
    y = {'gt': gt}

    loss = focal_loss_d3g(x, y)
    jax.block_until_ready(loss)

    # Pure-JAX reference (mirrors the PyTorch reshape/transpose/gather path).
    def ref_one(logits, tgt):
        b, t, k, h, w = logits.shape
        pred = logits.reshape(b * t, k, h * w).transpose(0, 2, 1).reshape(-1, k)
        lp = jax.nn.log_softmax(pred.astype(jnp.float32), axis=-1)
        logpt = jnp.take_along_axis(lp, tgt.reshape(-1, 1), axis=1)[:, 0]
        if GAMMA == 0.0:
            return jnp.mean(-logpt)
        pt = jnp.exp(logpt)
        return jnp.mean(-((1.0 - pt) ** GAMMA) * logpt)

    ref = ref_one(out_logits_s, gt) + CONS_LAMBDA * ref_one(out_logits_c, gt)
    assert jnp.allclose(loss, ref, rtol=1e-5, atol=1e-5), (loss, ref)

    print("KERNEL_OK")
</pallas_src>

<mosaic_0001>
module attributes {stable_mosaic.version = 11 : i64} {
  func.func @_fused_focal_kernel(%arg0: i32, %arg1: i32, %arg2: memref<1x1x256xi32, #tpu.memory_space<vmem>>, %arg3: memref<1x4x256xf32, #tpu.memory_space<vmem>>, %arg4: memref<1x4x256xf32, #tpu.memory_space<vmem>>, %arg5: memref<1x1xf32, #tpu.memory_space<vmem>>, %arg6: memref<1x256xf32, #tpu.memory_space<vmem>>) attributes {dimension_semantics = [#tpu.dimension_semantics<arbitrary>, #tpu.dimension_semantics<arbitrary>], iteration_bounds = array<i64: 4, 1>, scalar_prefetch = 0 : i64, scratch_operands = 1 : i64, tpu.core_type = #tpu.core_type<tc>, window_params = [{transform_indices = @transform_0, window_bounds = array<i64: 1, 1, 256>}, {transform_indices = @transform_1, window_bounds = array<i64: 1, 4, 256>}, {transform_indices = @transform_2, window_bounds = array<i64: 1, 4, 256>}, {pipeline_mode = #tpu.pipeline_mode<synchronous>, transform_indices = @transform_3, window_bounds = array<i64: 1, 1>}]} {
    %c0_i32 = arith.constant 0 : i32
    %0 = arith.cmpi eq, %arg0, %c0_i32 : i32
    %c0_i32_0 = arith.constant 0 : i32
    %1 = arith.cmpi eq, %arg1, %c0_i32_0 : i32
    %2 = arith.andi %0, %1 : i1
    %c3_i32 = arith.constant 3 : i32
    %3 = arith.cmpi eq, %arg0, %c3_i32 : i32
    %c0_i32_1 = arith.constant 0 : i32
    %4 = arith.cmpi eq, %arg1, %c0_i32_1 : i32
    %5 = arith.andi %3, %4 : i1
    %6 = arith.extui %2 : i1 to i32
    %c0_i32_2 = arith.constant 0 : i32
    %7 = arith.cmpi ne, %6, %c0_i32_2 : i32
    scf.if %7 {
      %cst_26 = arith.constant 0.000000e+00 : f32
      %58 = vector.broadcast %cst_26 : f32 to vector<1x256xf32>
      %c0_27 = arith.constant 0 : index
      %c0_28 = arith.constant 0 : index
      %59 = vector.load %arg6[%c0_27, %c0_28] : memref<1x256xf32, #tpu.memory_space<vmem>>, vector<1x256xf32>
      tpu.vector_store %arg6[%c0_27, %c0_28], %58 {strides = array<i32>} : memref<1x256xf32, #tpu.memory_space<vmem>>, vector<1x256xf32>,
    } else {
    }
    %c0 = arith.constant 0 : index
    %c0_3 = arith.constant 0 : index
    %c0_4 = arith.constant 0 : index
    %8 = vector.load %arg2[%c0, %c0_3, %c0_4] : memref<1x1x256xi32, #tpu.memory_space<vmem>>, vector<1x1x256xi32>
    %9 = vector.shape_cast %8 : vector<1x1x256xi32> to vector<1x256xi32>
    %c0_5 = arith.constant 0 : index
    %c0_6 = arith.constant 0 : index
    %c0_7 = arith.constant 0 : index
    %10 = vector.load %arg3[%c0_5, %c0_6, %c0_7] : memref<1x4x256xf32, #tpu.memory_space<vmem>>, vector<1x4x256xf32>
    %11 = vector.shape_cast %10 : vector<1x4x256xf32> to vector<4x256xf32>
    %cst = arith.constant dense<0xFF800000> : vector<256xf32>
    %12 = vector.multi_reduction <maximumf>, %11, %cst [0] : vector<4x256xf32> to vector<256xf32>
    %13 = vector.shape_cast %12 : vector<256xf32> to vector<1x256xf32>
    %14 = vector.broadcast %13 : vector<1x256xf32> to vector<4x256xf32>
    %15 = arith.subf %11, %14 : vector<4x256xf32>
    %16 = math.exp %15 : vector<4x256xf32>
    %cst_8 = arith.constant dense<0.000000e+00> : vector<256xf32>
    %17 = vector.multi_reduction <add>, %16, %cst_8 [0] : vector<4x256xf32> to vector<256xf32>
    %18 = vector.shape_cast %17 : vector<256xf32> to vector<1x256xf32>
    %19 = math.log %18 : vector<1x256xf32>
    %20 = tpu.iota {dimensions = array<i32: 0>} : vector<4x256xi32>
    %21 = vector.broadcast %9 : vector<1x256xi32> to vector<4x256xi32>
    %22 = arith.cmpi eq, %20, %21 : vector<4x256xi32>
    %cst_9 = arith.constant 0.000000e+00 : f32
    %23 = vector.broadcast %cst_9 : f32 to vector<4x256xf32>
    %24 = arith.select %22, %15, %23 : vector<4x256xi1>, vector<4x256xf32>
    %cst_10 = arith.constant dense<0.000000e+00> : vector<256xf32>
    %25 = vector.multi_reduction <add>, %24, %cst_10 [0] : vector<4x256xf32> to vector<256xf32>
    %26 = vector.shape_cast %25 : vector<256xf32> to vector<1x256xf32>
    %27 = arith.subf %26, %19 : vector<1x256xf32>
    %cst_11 = arith.constant 0.000000e+00 : f32
    %28 = vector.broadcast %cst_11 : f32 to vector<1x256xf32>
    %29 = arith.subf %28, %27 : vector<1x256xf32>
    %c0_12 = arith.constant 0 : index
    %c0_13 = arith.constant 0 : index
    %c0_14 = arith.constant 0 : index
    %30 = vector.load %arg4[%c0_12, %c0_13, %c0_14] : memref<1x4x256xf32, #tpu.memory_space<vmem>>, vector<1x4x256xf32>
    %31 = vector.shape_cast %30 : vector<1x4x256xf32> to vector<4x256xf32>
    %cst_15 = arith.constant dense<0xFF800000> : vector<256xf32>
    %32 = vector.multi_reduction <maximumf>, %31, %cst_15 [0] : vector<4x256xf32> to vector<256xf32>
    %33 = vector.shape_cast %32 : vector<256xf32> to vector<1x256xf32>
    %34 = vector.broadcast %33 : vector<1x256xf32> to vector<4x256xf32>
    %35 = arith.subf %31, %34 : vector<4x256xf32>
    %36 = math.exp %35 : vector<4x256xf32>
    %cst_16 = arith.constant dense<0.000000e+00> : vector<256xf32>
    %37 = vector.multi_reduction <add>, %36, %cst_16 [0] : vector<4x256xf32> to vector<256xf32>
    %38 = vector.shape_cast %37 : vector<256xf32> to vector<1x256xf32>
    %39 = math.log %38 : vector<1x256xf32>
    %40 = tpu.iota {dimensions = array<i32: 0>} : vector<4x256xi32>
    %41 = vector.broadcast %9 : vector<1x256xi32> to vector<4x256xi32>
    %42 = arith.cmpi eq, %40, %41 : vector<4x256xi32>
    %cst_17 = arith.constant 0.000000e+00 : f32
    %43 = vector.broadcast %cst_17 : f32 to vector<4x256xf32>
    %44 = arith.select %42, %35, %43 : vector<4x256xi1>, vector<4x256xf32>
    %cst_18 = arith.constant dense<0.000000e+00> : vector<256xf32>
    %45 = vector.multi_reduction <add>, %44, %cst_18 [0] : vector<4x256xf32> to vector<256xf32>
    %46 = vector.shape_cast %45 : vector<256xf32> to vector<1x256xf32>
    %47 = arith.subf %46, %39 : vector<1x256xf32>
    %cst_19 = arith.constant 0.000000e+00 : f32
    %48 = vector.broadcast %cst_19 : f32 to vector<1x256xf32>
    %49 = arith.subf %48, %47 : vector<1x256xf32>
    %cst_20 = arith.constant 5.000000e-01 : f32
    %50 = vector.broadcast %cst_20 : f32 to vector<1x256xf32>
    %51 = arith.mulf %50, %49 : vector<1x256xf32>
    %52 = arith.addf %29, %51 : vector<1x256xf32>
    %c0_21 = arith.constant 0 : index
    %c0_22 = arith.constant 0 : index
    %53 = vector.load %arg6[%c0_21, %c0_22] : memref<1x256xf32, #tpu.memory_space<vmem>>, vector<1x256xf32>
    %54 = arith.addf %53, %52 : vector<1x256xf32>
    %c0_23 = arith.constant 0 : index
    %c0_24 = arith.constant 0 : index
    %55 = vector.load %arg6[%c0_23, %c0_24] : memref<1x256xf32, #tpu.memory_space<vmem>>, vector<1x256xf32>
    tpu.vector_store %arg6[%c0_23, %c0_24], %54 {strides = array<i32>} : memref<1x256xf32, #tpu.memory_space<vmem>>, vector<1x256xf32>,
    %56 = arith.extui %5 : i1 to i32
    %c0_i32_25 = arith.constant 0 : i32
    %57 = arith.cmpi ne, %56, %c0_i32_25 : i32
    scf.if %57 {
      %c0_26 = arith.constant 0 : index
      %c0_27 = arith.constant 0 : index
      %58 = vector.load %arg6[%c0_26, %c0_27] : memref<1x256xf32, #tpu.memory_space<vmem>>, vector<1x256xf32>
      %cst_28 = arith.constant dense<0.000000e+00> : vector<1xf32>
      %59 = vector.multi_reduction <add>, %58, %cst_28 [1] : vector<1x256xf32> to vector<1xf32>
      %60 = vector.shape_cast %59 : vector<1xf32> to vector<1x1xf32>
      %cst_29 = arith.constant 9.765625E-4 : f32
      %61 = vector.broadcast %cst_29 : f32 to vector<1x1xf32>
      %62 = arith.mulf %60, %61 : vector<1x1xf32>
      %c0_30 = arith.constant 0 : index
      %c0_31 = arith.constant 0 : index
      %63 = vector.load %arg5[%c0_30, %c0_31] : memref<1x1xf32, #tpu.memory_space<vmem>>, vector<1x1xf32>
      tpu.vector_store %arg5[%c0_30, %c0_31], %62 {strides = array<i32>} : memref<1x1xf32, #tpu.memory_space<vmem>>, vector<1x1xf32>,
    } else {
    }
    return
  }
  func.func @transform_0(%arg0: i32, %arg1: i32) -> (i32, i32, i32) {
    %c0_i32 = arith.constant 0 : i32
    %c0_i32_0 = arith.constant 0 : i32
    return %arg0, %c0_i32, %arg1 : i32, i32, i32
  }
  func.func @transform_1(%arg0: i32, %arg1: i32) -> (i32, i32, i32) {
    %c0_i32 = arith.constant 0 : i32
    %c0_i32_0 = arith.constant 0 : i32
    return %arg0, %c0_i32, %arg1 : i32, i32, i32
  }
  func.func @transform_2(%arg0: i32, %arg1: i32) -> (i32, i32, i32) {
    %c0_i32 = arith.constant 0 : i32
    %c0_i32_0 = arith.constant 0 : i32
    return %arg0, %c0_i32, %arg1 : i32, i32, i32
  }
  func.func @transform_3(%arg0: i32, %arg1: i32) -> (i32, i32) {
    %c0_i32 = arith.constant 0 : i32
    %c0_i32_0 = arith.constant 0 : i32
    %c0_i32_1 = arith.constant 0 : i32
    return %c0_i32, %c0_i32_0 : i32, i32
  }
}

</mosaic_0001>

<llo_original>
// kernel: tpu_custom_call.1
$region0: #{tpu_custom_call.1}
  #allocation0 [shape = 'u32[]', space=smem, size = 0x4, offset = 0x4, fixed_abs, tag = 'smem constant byte address 0x4 - core index']
  #allocation1 [shape = 'u32[144,128]{1,0:T(1,128)}', space=vmem, size = 0x12000, scoped, tag = 'internal scratch']
  #allocation2 [shape = 'f32[1,256]{1,0:T(1,128)}', space=vmem, size = 0x400, scoped, tag = 'scratch operand']
  %s0 = inlined_call_operand.hbm [shape: s32[4,1,256], index: 0, kind: input, shape index: {}]
  %s1 = inlined_call_operand.hbm [shape: f32[4,4,256], index: 1, kind: input, shape index: {}]
  %s2 = inlined_call_operand.hbm [shape: f32[4,4,256], index: 2, kind: input, shape index: {}]
  %s3 = inlined_call_operand.hbm [shape: f32[1,1], index: 3, kind: output, shape index: {}]
  %s4 = sld [smem:[#allocation0]]
  $region65: #{tpu_custom_call.1} parent=0
    _
  %s6 = ssub.s32 1, %s4
  %s7 = scalar_select 0, %s6, %s4
  $region1: #{tpu_custom_call.1} parent=0
    #allocation3 [shape = 'u8[2048]{0}', space=vmem, size = 0x800, scoped, tag = 'input window, operand 0']
    #allocation4 [shape = 's32[2]{0}', space=sflag, size = 0x8, scoped, tag = 'scoped memory for tpu_custom_call.1']
    #allocation5 [shape = 's32[2]{0}', space=sflag, size = 0x8, scoped, tag = 'scoped memory for tpu_custom_call.1']
    #allocation6 [shape = 'u8[8192]{0}', space=vmem, size = 0x2000, scoped, tag = 'input window, operand 1']
    #allocation7 [shape = 's32[2]{0}', space=sflag, size = 0x8, scoped, tag = 'scoped memory for tpu_custom_call.1']
    #allocation8 [shape = 'u8[8192]{0}', space=vmem, size = 0x2000, scoped, tag = 'input window, operand 2']
    #allocation9 [shape = 'u8[512]{0}', space=vmem, size = 0x400, scoped, tag = 'output window, operand 0, single buffered']
    %8 = vsyncpa [#allocation4], 0
    %s9 = scalar_lea.sflag [#allocation4], 1
    %10 = vsyncpa %s9, 0
    %11 = vsyncpa [#allocation7], 0
    %s12 = scalar_lea.sflag [#allocation7], 1
    %13 = vsyncpa %s12, 0
    %14 = vsyncpa [#allocation5], 0
    loop: start=0, step=1, limit=6
    $region2: #{tpu_custom_call.1} parent=1 // loop_pre_header
      _
    $region3: #{tpu_custom_call.1} parent=1 // loop_header
      %s16 = sphi 0, %s20
      %p17 = scmp.ge.s32.totalorder %s16, 6
      %s23 = sphi 0, %s35
      %s24 = sphi 0, %s31
      %s25 = sphi 0, %s23
      %s26 = sphi 0, %s24
      %s27 = sphi 0, %s25
      %s28 = sphi 0, %s26
      %s40 = sphi 0, %s42
      %s43 = sphi 0, %s40
      %s44 = sphi 0, %s43
      %s60 = sphi 0, %s44
      %s68 = sphi 0, %s70
      %s71 = sphi 0, %s68
      %s72 = sphi 0, %s71
      %s88 = sphi 0, %s72
      %s96 = sphi 0, %s98
      %s99 = sphi 0, %s96
      %s100 = sphi 0, %s99
      %s116 = sphi 0, %s100
      %s120 = sphi 0, %s120
      %s122 = sphi 0, %s120
      %s123 = sphi 0, %s122
      %s137 = sphi 0, %s123
    $region4: #{tpu_custom_call.1} parent=1 // loop_header_branch
      %19 = sbr.rel (%p17) target = $region8
    $region5: #{tpu_custom_call.1} parent=1 // loop_body
      %s21 = ssub.s32 %s16, 1
      %s22 = ssub.s32 %s16, 2
      %s29 = sadd.s32 1, %s24
      %p30 = scmp.ge.s32.totalorder %s29, 1
      %s31 = scalar_select %p30, 0, %s29
      %s32 = sadd.s32 1, %s23
      %s33 = scalar_select %p30, %s32, %s23
      %p34 = scmp.ge.s32.totalorder %s33, 4
      %s35 = scalar_select %p34, 0, %s33
      %s36 = ssub.s32 %s23, %s35
      %s37 = ssub.s32 %s24, %s31
      %s38 = sor.u32 %s36, %s37
      %p39 = scmp.eq.s32.totalorder %s38, 0
      %s41 = sadd.s32 %s40, 1
      %s42 = scalar_select %p39, %s40, %s41
      %p45 = pneg %p39
      %p46 = scmp.eq.s32.totalorder %s16, 3
      %p47 = por %p45, %p46
      %p48 = scmp.ne.s32.totalorder %s40, %s43
      %p49 = scmp.eq.s32.totalorder %s16, 0
      %p50 = por %p48, %p49
      %p51 = scmp.ne.s32.totalorder %s40, %s43
      %p52 = scmp.eq.s32.totalorder %s21, 3
      %p53 = por %p51, %p52
      %p54 = scmp.ne.s32.totalorder %s43, %s44
      %p55 = scmp.eq.s32.totalorder %s21, 0
      %p56 = por %p54, %p55
      %p57 = scmp.ne.s32.totalorder %s43, %s44
      %p58 = scmp.eq.s32.totalorder %s22, 3
      %p59 = por %p57, %p58
      %p61 = scmp.ne.s32.totalorder %s44, %s60
      %p62 = scmp.eq.s32.totalorder %s22, 0
      %p63 = por %p61, %p62
      %s64 = ssub.s32 %s23, %s35
      %s65 = ssub.s32 %s24, %s31
      %s66 = sor.u32 %s64, %s65
      %p67 = scmp.eq.s32.totalorder %s66, 0
      %s69 = sadd.s32 %s68, 1
      %s70 = scalar_select %p67, %s68, %s69
      %p73 = pneg %p67
      %p74 = scmp.eq.s32.totalorder %s16, 3
      %p75 = por %p73, %p74
      %p76 = scmp.ne.s32.totalorder %s68, %s71
      %p77 = scmp.eq.s32.totalorder %s16, 0
      %p78 = por %p76, %p77
      %p79 = scmp.ne.s32.totalorder %s68, %s71
      %p80 = scmp.eq.s32.totalorder %s21, 3
      %p81 = por %p79, %p80
      %p82 = scmp.ne.s32.totalorder %s71, %s72
      %p83 = scmp.eq.s32.totalorder %s21, 0
      %p84 = por %p82, %p83
      %p85 = scmp.ne.s32.totalorder %s71, %s72
      %p86 = scmp.eq.s32.totalorder %s22, 3
      %p87 = por %p85, %p86
      %p89 = scmp.ne.s32.totalorder %s72, %s88
      %p90 = scmp.eq.s32.totalorder %s22, 0
      %p91 = por %p89, %p90
      %s92 = ssub.s32 %s23, %s35
      %s93 = ssub.s32 %s24, %s31
      %s94 = sor.u32 %s92, %s93
      %p95 = scmp.eq.s32.totalorder %s94, 0
      %s97 = sadd.s32 %s96, 1
      %s98 = scalar_select %p95, %s96, %s97
      %p101 = pneg %p95
      %p102 = scmp.eq.s32.totalorder %s16, 3
      %p103 = por %p101, %p102
      %p104 = scmp.ne.s32.totalorder %s96, %s99
      %p105 = scmp.eq.s32.totalorder %s16, 0
      %p106 = por %p104, %p105
      %p107 = scmp.ne.s32.totalorder %s96, %s99
      %p108 = scmp.eq.s32.totalorder %s21, 3
      %p109 = por %p107, %p108
      %p110 = scmp.ne.s32.totalorder %s99, %s100
      %p111 = scmp.eq.s32.totalorder %s21, 0
      %p112 = por %p110, %p111
      %p113 = scmp.ne.s32.totalorder %s99, %s100
      %p114 = scmp.eq.s32.totalorder %s22, 3
      %p115 = por %p113, %p114
      %p117 = scmp.ne.s32.totalorder %s100, %s116
      %p118 = scmp.eq.s32.totalorder %s22, 0
      %p119 = por %p117, %p118
      %s121 = sadd.s32 %s120, 1
      %p124 = scmp.eq.s32.totalorder %s16, 3
      %p125 = scmp.ne.s32.totalorder %s120, %s122
      %p126 = scmp.eq.s32.totalorder %s16, 0
      %p127 = por %p125, %p126
      %p128 = scmp.ne.s32.totalorder %s120, %s122
      %p129 = scmp.eq.s32.totalorder %s21, 3
      %p130 = por %p128, %p129
      %p131 = scmp.ne.s32.totalorder %s122, %s123
      %p132 = scmp.eq.s32.totalorder %s21, 0
      %p133 = por %p131, %p132
      %p134 = scmp.ne.s32.totalorder %s122, %s123
      %p135 = scmp.eq.s32.totalorder %s22, 3
      %p136 = por %p134, %p135
      %p138 = scmp.ne.s32.totalorder %s123, %s137
      %p139 = scmp.eq.s32.totalorder %s22, 0
      %p140 = por %p138, %p139
      %p141 = scmp.le.s32.totalorder 1, %s16
      %p142 = scmp.lt.s32.totalorder %s16, 5
      %p143 = pnand %p141, %p142
      %p144 = pneg %p143
      // Predicated region
      $region9: #{tpu_custom_call.1} parent=5 // pred_check
        _
      $region10: #{tpu_custom_call.1} parent=5 // pred_check_branch
        %146 = sbr.rel (%p143) target = $region12
      $region11: #{tpu_custom_call.1} parent=5 // pred_region
        %s147 = ssub.s32 %s16, 1
      $region12: #{tpu_custom_call.1} parent=5 // pred_fallthru
        _
      %p148 = scmp.lt.s32.totalorder %s16, 4
      // Predicated region
      $region13: #{tpu_custom_call.1} parent=5 // pred_check
        %p149 = pneg %p148
      $region14: #{tpu_custom_call.1} parent=5 // pred_check_branch
        %151 = sbr.rel (%p149) target = $region16
      $region15: #{tpu_custom_call.1} parent=5 // pred_region
        // Predicated region
        $region17: #{tpu_custom_call.1} parent=15 // pred_check
          %p152 = pneg %p50
        $region18: #{tpu_custom_call.1} parent=15 // pred_check_branch
          %154 = sbr.rel (%p152) target = $region20
        $region19: #{tpu_custom_call.1} parent=15 // pred_region
          %s155 = sand.u32 %s40, 1
          %s156 = scalar_lea.sflag [#allocation4], %s155
          %s157 = sand.u32 %s40, 1
          %s158 = smul.addr %s157, 2
          %s159 = scalar_lea.vmem [#allocation3], %s158
          %s160 = smul.u32 2, %s24
          %s162 = ssub.s32 32, 32
          %163 = vsyncadd %s156, %s162
          %s164 = smul.addr %s23, 2
          %s165 = sadd.s32 %s160, %s164
          %s166 = smul.addr %s165, 16
          %s167 = scalar_lea.hbm %s0, %s166
          %s169 = sshll.u32 %s159, 4
          %s170 = int_to_ptr.vmem [resolvable:$true] %s169
          %172 = dma.hbm_to_vmem [thread:$0]  %s167, 32, %s170, %s156
        $region20: #{tpu_custom_call.1} parent=15 // pred_fallthru
          _
        // Predicated region
        $region21: #{tpu_custom_call.1} parent=15 // pred_check
          %p173 = pneg %p78
        $region22: #{tpu_custom_call.1} parent=15 // pred_check_branch
          %175 = sbr.rel (%p173) target = $region24
        $region23: #{tpu_custom_call.1} parent=15 // pred_region
          %s176 = sand.u32 %s16, 1
          %s177 = scalar_lea.sflag [#allocation7], %s176
          %s178 = sand.u32 %s68, 1
          %s179 = smul.addr %s178, 8
          %s180 = scalar_lea.vmem [#allocation6], %s179
          %s181 = smul.u32 2, %s24
          %s183 = ssub.s32 128, 128
          %184 = vsyncadd %s177, %s183
          %s185 = smul.addr %s23, 2
          %s186 = sadd.s32 %s181, %s185
          %s187 = smul.addr %s186, 64
          %s188 = scalar_lea.hbm %s1, %s187
          %s190 = sshll.u32 %s180, 4
          %s191 = int_to_ptr.vmem [resolvable:$true] %s190
          %193 = dma.hbm_to_vmem [thread:$0]  %s188, 128, %s191, %s177
        $region24: #{tpu_custom_call.1} parent=15 // pred_fallthru
          _
        // Predicated region
        $region25: #{tpu_custom_call.1} parent=15 // pred_check
          %p194 = pneg %p106
        $region26: #{tpu_custom_call.1} parent=15 // pred_check_branch
          %196 = sbr.rel (%p194) target = $region28
        $region27: #{tpu_custom_call.1} parent=15 // pred_region
          %s197 = sand.u32 %s16, 1
          %s198 = scalar_lea.sflag [#allocation7], %s197
          %s199 = sand.u32 %s96, 1
          %s200 = smul.addr %s199, 8
          %s201 = scalar_lea.vmem [#allocation8], %s200
          %s202 = smul.u32 2, %s24
          %s204 = ssub.s32 128, 128
          %205 = vsyncadd %s198, %s204
          %s206 = smul.addr %s23, 2
          %s207 = sadd.s32 %s202, %s206
          %s208 = smul.addr %s207, 64
          %s209 = scalar_lea.hbm %s2, %s208
          %s211 = sshll.u32 %s201, 4
          %s212 = int_to_ptr.vmem [resolvable:$true] %s211
          %214 = dma.hbm_to_vmem [thread:$0]  %s209, 128, %s212, %s198
        $region28: #{tpu_custom_call.1} parent=15 // pred_fallthru
          _
      $region16: #{tpu_custom_call.1} parent=5 // pred_fallthru
        _
      %p215 = scmp.le.s32.totalorder 1, %s16
      %p216 = scmp.lt.s32.totalorder %s16, 5
      %p217 = pnand %p215, %p216
      %p218 = pneg %p217
      // Predicated region
      $region29: #{tpu_custom_call.1} parent=5 // pred_check
        _
      $region30: #{tpu_custom_call.1} parent=5 // pred_check_branch
        %220 = sbr.rel (%p217) target = $region32
      $region31: #{tpu_custom_call.1} parent=5 // pred_region
        %s221 = ssub.s32 %s16, 1
        %s222 = sand.u32 %s43, 1
        %s223 = scalar_lea.sflag [#allocation4], %s222
        %s224 = sand.u32 %s43, 1
        %s225 = smul.addr %s224, 2
        %s226 = scalar_lea.vmem [#allocation3], %s225
        // Predicated region
        $region33: #{tpu_custom_call.1} parent=31 // pred_check
          %p227 = pneg %p56
        $region34: #{tpu_custom_call.1} parent=31 // pred_check_branch
          %229 = sbr.rel (%p227) target = $region36
        $region35: #{tpu_custom_call.1} parent=31 // pred_region
          %230 = dma.done %s223, 32
        $region36: #{tpu_custom_call.1} parent=31 // pred_fallthru
          _
        %s231 = sand.u32 %s21, 1
        %s232 = scalar_lea.sflag [#allocation7], %s231
        %s233 = sand.u32 %s71, 1
        %s234 = smul.addr %s233, 8
        %s235 = scalar_lea.vmem [#allocation6], %s234
        // Predicated region
        $region37: #{tpu_custom_call.1} parent=31 // pred_check
          %p236 = pneg %p84
        $region38: #{tpu_custom_call.1} parent=31 // pred_check_branch
          %238 = sbr.rel (%p236) target = $region40
        $region39: #{tpu_custom_call.1} parent=31 // pred_region
          %239 = dma.done %s232, 128
        $region40: #{tpu_custom_call.1} parent=31 // pred_fallthru
          _
        %s240 = sand.u32 %s21, 1
        %s241 = scalar_lea.sflag [#allocation7], %s240
        %s242 = sand.u32 %s99, 1
        %s243 = smul.addr %s242, 8
        %s244 = scalar_lea.vmem [#allocation8], %s243
        // Predicated region
        $region41: #{tpu_custom_call.1} parent=31 // pred_check
          %p245 = pneg %p112
        $region42: #{tpu_custom_call.1} parent=31 // pred_check_branch
          %247 = sbr.rel (%p245) target = $region44
        $region43: #{tpu_custom_call.1} parent=31 // pred_region
          %248 = dma.done %s241, 128
        $region44: #{tpu_custom_call.1} parent=31 // pred_fallthru
          _
        %s249 = sand.u32 %s43, 1
        %s250 = scalar_lea.sflag [#allocation4], %s249
        %s251 = sand.u32 %s43, 1
        %s252 = smul.addr %s251, 2
        %s253 = scalar_lea.vmem [#allocation3], %s252
        %p254 = pneg %p56
        %p255 = pneg %p53
        %s256 = sand.u32 %s21, 1
        %s257 = scalar_lea.sflag [#allocation7], %s256
        %s258 = sand.u32 %s71, 1
        %s259 = smul.addr %s258, 8
        %s260 = scalar_lea.vmem [#allocation6], %s259
        %p261 = pneg %p84
        %p262 = pneg %p81
        %s263 = sand.u32 %s21, 1
        %s264 = scalar_lea.sflag [#allocation7], %s263
        %s265 = sand.u32 %s99, 1
        %s266 = smul.addr %s265, 8
        %s267 = scalar_lea.vmem [#allocation8], %s266
        %p268 = pneg %p112
        %p269 = pneg %p109
        %p270 = pneg %p133
        %p271 = pneg %p130
        %s272 = smul.u32 2, %s26
        %s273 = smul.u32 2, %s26
        %s274 = smul.u32 2, %s26
        %p275 = scmp.eq.s32.totalorder %s25, 0
        %p276 = scmp.eq.s32.totalorder %s26, 0
        %p277 = pnand %p275, %p276
        %p278 = pneg %p277
        %p279 = scmp.eq.s32.totalorder %s25, 3
        %p280 = pnand %p279, %p276
        %p281 = pneg %p280
        // Predicated region
        $region45: #{tpu_custom_call.1} parent=31 // pred_check
          _
        $region46: #{tpu_custom_call.1} parent=31 // pred_check_branch
          %283 = sbr.rel (%p277) target = $region48
        $region47: #{tpu_custom_call.1} parent=31 // pred_region
          %v284 = vlaneseq
          %vm285 = vcmp.ge.s32.totalorder %v284, 0
          %vm286 = vcmp.lt.s32.totalorder %v284, 256
          %vm287 = vmand %vm285, %vm286
          %288 = vst.msk [vmem:[#allocation2] sm:$0x3] %vm287, 0.0
        $region48: #{tpu_custom_call.1} parent=31 // pred_fallthru
          _
        %v289 = vld [vmem:[%s226] sm:$0x3]
        %v290 = vld [vmem:[%s235] sm:$0xff]
        %v292 = vcombine.high %v290, %v290
        %vm294 = vcmask 1043456
        %v295 = vsel %vm294, %v290, -inf
        %v296 = vrot.slane %v295, 4
        %v297 = vmax.f32 %v295, %v296
        %v298 = vrot.slane %v297, 2
        %v299 = vmax.f32 %v297, %v298
        %v300 = vrot.slane %v299, 1
        %v301 = vmax.f32 %v299, %v300
        %v302 = vsel %vm294, %v292, -inf
        %v303 = vrot.slane %v302, 4
        %v304 = vmax.f32 %v302, %v303
        %v305 = vrot.slane %v304, 2
        %v306 = vmax.f32 %v304, %v305
        %v307 = vrot.slane %v306, 1
        %v308 = vmax.f32 %v306, %v307
        %v311 = vcombine.low %v301, %v308
        %v313 = vsub.f32 %v290, %v311
        %v314 = vmul.f32 %v313, 1.442695
        %v315 = vpow.pop %v314
        %v317 = vcombine.high %v315, %v315
        %v319 = vsel %vm294, %v315, 0.0
        %v320 = vrot.slane %v319, 4
        %v321 = vadd.f32 %v319, %v320
        %v322 = vrot.slane %v321, 2
        %v323 = vadd.f32 %v321, %v322
        %v324 = vrot.slane %v323, 1
        %v325 = vadd.f32 %v323, %v324
        %v326 = vsel %vm294, %v317, 0.0
        %v327 = vrot.slane %v326, 4
        %v328 = vadd.f32 %v326, %v327
        %v329 = vrot.slane %v328, 2
        %v330 = vadd.f32 %v328, %v329
        %v331 = vrot.slane %v330, 1
        %v332 = vadd.f32 %v330, %v331
        %v333 = vlog2.pop %v325
        %v334 = vmul.f32 %v333, 0.6931472
        %v335 = vlog2.pop %v332
        %v336 = vmul.f32 %v335, 0.6931472
        %v337 = vlaneseq
        %v338 = vshrl.u32 %v337, 7
        %v339 = vlaneseq
        %v340 = vshrl.u32 %v339, 7
        %v341 = vsub.s32 0, %v340
        %v342 = vrot.slane %v289, %v341
        %v343 = vlaneseq
        %v344 = vshrl.u32 %v343, 7
        %v345 = vsub.s32 1, %v344
        %v346 = vrot.slane %v289, %v345
        %vm347 = vcmp.eq.s32.totalorder %v338, %v342
        %vm348 = vcmp.eq.s32.totalorder %v338, %v346
        %v350 = vcombine.high %v313, %v313
        %v352 = vsel %vm347, %v313, 0.0
        %v353 = vsel %vm348, %v350, 0.0
        %v354 = vsel %vm294, %v352, 0.0
        %v355 = vrot.slane %v354, 4
        %v356 = vadd.f32 %v354, %v355
        %v357 = vrot.slane %v356, 2
        %v358 = vadd.f32 %v356, %v357
        %v359 = vrot.slane %v358, 1
        %v360 = vadd.f32 %v358, %v359
        %v361 = vsel %vm294, %v353, 0.0
        %v362 = vrot.slane %v361, 4
        %v363 = vadd.f32 %v361, %v362
        %v364 = vrot.slane %v363, 2
        %v365 = vadd.f32 %v363, %v364
        %v366 = vrot.slane %v365, 1
        %v367 = vadd.f32 %v365, %v366
        %v368 = vsub.f32 %v360, %v334
        %v369 = vsub.f32 %v367, %v336
        %v370 = vsub.f32 0.0, %v368
        %v371 = vsub.f32 0.0, %v369
        %v372 = vld [vmem:[%s244] sm:$0xff]
        %v374 = vcombine.high %v372, %v372
        %v376 = vsel %vm294, %v372, -inf
        %v377 = vrot.slane %v376, 4
        %v378 = vmax.f32 %v376, %v377
        %v379 = vrot.slane %v378, 2
        %v380 = vmax.f32 %v378, %v379
        %v381 = vrot.slane %v380, 1
        %v382 = vmax.f32 %v380, %v381
        %v383 = vsel %vm294, %v374, -inf
        %v384 = vrot.slane %v383, 4
        %v385 = vmax.f32 %v383, %v384
        %v386 = vrot.slane %v385, 2
        %v387 = vmax.f32 %v385, %v386
        %v388 = vrot.slane %v387, 1
        %v389 = vmax.f32 %v387, %v388
        %v392 = vcombine.low %v382, %v389
        %v394 = vsub.f32 %v372, %v392
        %v395 = vmul.f32 %v394, 1.442695
        %v396 = vpow.pop %v395
        %v398 = vcombine.high %v396, %v396
        %v400 = vsel %vm294, %v396, 0.0
        %v401 = vrot.slane %v400, 4
        %v402 = vadd.f32 %v400, %v401
        %v403 = vrot.slane %v402, 2
        %v404 = vadd.f32 %v402, %v403
        %v405 = vrot.slane %v404, 1
        %v406 = vadd.f32 %v404, %v405
        %v407 = vsel %vm294, %v398, 0.0
        %v408 = vrot.slane %v407, 4
        %v409 = vadd.f32 %v407, %v408
        %v410 = vrot.slane %v409, 2
        %v411 = vadd.f32 %v409, %v410
        %v412 = vrot.slane %v411, 1
        %v413 = vadd.f32 %v411, %v412
        %v414 = vlog2.pop %v406
        %v415 = vmul.f32 %v414, 0.6931472
        %v416 = vlog2.pop %v413
        %v417 = vmul.f32 %v416, 0.6931472
        %v419 = vcombine.high %v394, %v394
        %v421 = vsel %vm347, %v394, 0.0
        %v422 = vsel %vm348, %v419, 0.0
        %v423 = vsel %vm294, %v421, 0.0
        %v424 = vrot.slane %v423, 4
        %v425 = vadd.f32 %v423, %v424
        %v426 = vrot.slane %v425, 2
        %v427 = vadd.f32 %v425, %v426
        %v428 = vrot.slane %v427, 1
        %v429 = vadd.f32 %v427, %v428
        %v430 = vsel %vm294, %v422, 0.0
        %v431 = vrot.slane %v430, 4
        %v432 = vadd.f32 %v430, %v431
        %v433 = vrot.slane %v432, 2
        %v434 = vadd.f32 %v432, %v433
        %v435 = vrot.slane %v434, 1
        %v436 = vadd.f32 %v434, %v435
        %v437 = vsub.f32 %v429, %v415
        %v438 = vsub.f32 %v436, %v417
        %v439 = vsub.f32 0.0, %v437
        %v440 = vsub.f32 0.0, %v438
        %v441 = vmul.f32 %v439, 0.5
        %v442 = vmul.f32 %v440, 0.5
        %v443 = vadd.f32 %v370, %v441
        %v444 = vadd.f32 %v371, %v442
        %v445 = vld [vmem:[#allocation2] sm:$0x3]
        %v448 = vcombine.low %v443, %v444
        %v450 = vunpack.c.l.s4 1966171168
        %v451 = vunpack.c.0.s8 %v450
        %v452 = vlaneseq
        %v453 = vshrl.u32 %v452, 7
        %v454 = vsub.s32 %v451, %v453
        %v455 = vrot.slane %v448, %v454
        %v457 = vunpack.c.l.s4 1966171168
        %v458 = vunpack.c.0.s8 %v457
        %v459 = vlaneseq
        %v460 = vshrl.u32 %v459, 7
        %v461 = vsub.s32 %v458, %v460
        %v462 = vrot.slane %v455, %v461
        %v464 = vadd.f32 %v445, %v462
        %v465 = vlaneseq
        %vm466 = vcmp.ge.s32.totalorder %v465, 0
        %vm467 = vcmp.lt.s32.totalorder %v465, 256
        %vm468 = vmand %vm466, %vm467
        %469 = vst.msk [vmem:[#allocation2] sm:$0x3] %vm468, %v464
        // Predicated region
        $region49: #{tpu_custom_call.1} parent=31 // pred_check
          _
        $region50: #{tpu_custom_call.1} parent=31 // pred_check_branch
          %471 = sbr.rel (%p280) target = $region52
        $region51: #{tpu_custom_call.1} parent=31 // pred_region
          %v472 = vld [vmem:[#allocation2] sm:$0x3]
          %v474 = vlaneseq
          %v475 = vshrl.u32 %v474, 7
          %v476 = vsub.s32 0, %v475
          %v477 = vrot.slane %v472, %v476
          %v478 = vlaneseq
          %v479 = vshrl.u32 %v478, 7
          %v480 = vsub.s32 1, %v479
          %v481 = vrot.slane %v472, %v480
          %vm484 = vcmask 1040384
          %v485 = vsel %vm484, %v477, 0.0
          %v486 = vsel %vm484, %v481, 0.0
          %v487 = vadd.f32 %v485, %v486
          %488 = vadd.xlane.f32.xlu0 %v487
          %v489 = vpop.xlane.xlu0 %488
          %v490 = vmul.f32 %v489, 0.0009765625
          %vm491 = vcmask 0
          %492 = vst.msk [vmem:[#allocation9] sm:$0x1] %vm491, %v490
        $region52: #{tpu_custom_call.1} parent=31 // pred_fallthru
          _
        // Predicated region
        $region53: #{tpu_custom_call.1} parent=31 // pred_check
          %p493 = pneg %p130
        $region54: #{tpu_custom_call.1} parent=31 // pred_check_branch
          %495 = sbr.rel (%p493) target = $region56
        $region55: #{tpu_custom_call.1} parent=31 // pred_region
          %s497 = ssub.s32 16, 16
          %498 = vsyncadd [#allocation5], %s497
          %s500 = sshll.u32 [#allocation9], 4
          %s501 = int_to_ptr.vmem [resolvable:$true] %s500
          %503 = dma.vmem_to_hbm [thread:$0]  %s501, 16, %s3, [#allocation5]
        $region56: #{tpu_custom_call.1} parent=31 // pred_fallthru
          _
        // Predicated region
        $region57: #{tpu_custom_call.1} parent=31 // pred_check
          %p504 = pneg %p130
        $region58: #{tpu_custom_call.1} parent=31 // pred_check_branch
          %506 = sbr.rel (%p504) target = $region60
        $region59: #{tpu_custom_call.1} parent=31 // pred_region
          %507 = dma.done [#allocation5], 16
        $region60: #{tpu_custom_call.1} parent=31 // pred_fallthru
          _
      $region32: #{tpu_custom_call.1} parent=5 // pred_fallthru
        _
      %p508 = scmp.le.s32.totalorder 2, %s16
      // Predicated region
      $region61: #{tpu_custom_call.1} parent=5 // pred_check
        %p509 = pneg %p508
      $region62: #{tpu_custom_call.1} parent=5 // pred_check_branch
        %511 = sbr.rel (%p509) target = $region64
      $region63: #{tpu_custom_call.1} parent=5 // pred_region
        %s512 = ssub.s32 %s16, 2
      $region64: #{tpu_custom_call.1} parent=5 // pred_fallthru
        _
    $region6: #{tpu_custom_call.1} parent=1 // loop_footer
      %s20 = sadd.s32 1, %s16
    $region7: #{tpu_custom_call.1} parent=1 // loop_footer_branch
      %15 = sbr.rel target = $region3
    $region8: #{tpu_custom_call.1} parent=1 // loop_exit
      _
    %513 = vsyncpa [#allocation4], 1
    %s514 = scalar_lea.sflag [#allocation4], 1
    %515 = vsyncpa %s514, 1
    %516 = vsyncpa [#allocation7], 1
    %s517 = scalar_lea.sflag [#allocation7], 1
    %518 = vsyncpa %s517, 1
    %519 = vsyncpa [#allocation5], 1
    %s520 = scalar_lea.sflag [#allocation5], 1
    %521 = vsyncpa %s520, 1

</llo_original>
